<compile_context>
chip_gen: v7x
topology: tpu7x:2x2x1
jax: 0.10.0
libtpu: 0.0.40
codegen_flags: <defaults>
</compile_context>

<pallas_src>
import jax
import jax.numpy as jnp
from jax.experimental import pallas as pl
from jax.experimental.pallas import tpu as pltpu


def _round_up(x, m):
    return ((x + m - 1) // m) * m


def _classifier_kernel(h_ref, w_ref, b_ref, out_ref):
    # h_ref  : (TB, Dp) f32   final-token hidden states (gathered by BlockSpec)
    # w_ref  : (Dp, Lp) bf16  classifier head weight, label axis zero-padded
    # b_ref  : (1, Lp)  f32   bias; padded label columns hold -1e30 (baked mask)
    # out_ref: (TB, Lp) f32   log-probabilities (padded label axis)
    h = h_ref[...].astype(jnp.bfloat16)                 # cast inside the kernel
    logits = jnp.dot(h, w_ref[...], preferred_element_type=jnp.float32)
    logits = logits + b_ref[...]                        # bias add also applies the pad mask

    # numerically-stable log-softmax along the label axis (all f32)
    m = jnp.max(logits, axis=-1, keepdims=True)
    shifted = logits - m
    lse = jnp.log(jnp.sum(jnp.exp(shifted), axis=-1, keepdims=True))
    out_ref[...] = (shifted - lse).astype(out_ref.dtype)


def llama_embedding_classifier(hidden_states, w_head, b_head):
    """hidden_states: (B, T, D); w_head: (D, L); b_head: (L,) -> (B, L) f32 log-probs."""
    B, T, D = hidden_states.shape
    L = w_head.shape[1]

    # Lane-dense padding of the model and label axes (no-op for aligned D).
    Dp = _round_up(D, 128)
    Lp = _round_up(L, 128)
    if Dp != D:  # toy / unaligned dims only; real Llama D=4096 skips this
        hidden_states = jnp.pad(hidden_states, ((0, 0), (0, 0), (0, Dp - D)))
        w_head = jnp.pad(w_head, ((0, Dp - D), (0, 0)))

    # Free reshape (row-major contiguous): the final-token gather becomes a
    # column-block select inside the kernel's BlockSpec.
    h2 = hidden_states.reshape(B, T * Dp)

    # Zero-pad the label axis of W; bake the padded-label mask into the bias
    # as a large FINITE negative so max/exp stay NaN-free.
    w_p = jnp.pad(w_head, ((0, 0), (0, Lp - L))).astype(jnp.bfloat16)
    b_p = jnp.pad(b_head.astype(jnp.float32), (0, Lp - L),
                  constant_values=-1e30).reshape(1, Lp)

    # --- generation-aware tiling / VMEM limits ----------------------------
    try:
        kind = jax.devices()[0].device_kind.lower()
    except Exception:
        kind = ""
    is_v5e = ("v5e" in kind) or ("v5 lite" in kind) or ("v5litepod" in kind)
    is_v7 = "v7" in kind

    cap = 128 if is_v5e else 256                 # v6e/v7x MXU passes are 256-wide
    if B <= cap:
        TB = B                                   # single tile spans the full batch dim
        if is_v7 and B >= 16:
            # split so both v7x TensorCores get work on the "parallel" axis
            TB = _round_up(pl.cdiv(B, 2), 8)
    else:
        TB = cap
    n_tiles = pl.cdiv(B, TB)                     # partial last block handled by Pallas

    if is_v7:
        vmem_limit = 48 * 1024 * 1024            # v7x has 64 MiB VMEM per core
    elif is_v5e or ("v6" in kind):
        vmem_limit = 96 * 1024 * 1024            # 128 MiB physical on v5e/v6e
    else:
        vmem_limit = 64 * 1024 * 1024

    h_bytes = jnp.dtype(h2.dtype).itemsize

    def _make_call(single_buffer_resident):
        resident_kwargs = (
            dict(pipeline_mode=pl.Buffered(1)) if single_buffer_resident else {}
        )
        return pl.pallas_call(
            _classifier_kernel,
            out_shape=jax.ShapeDtypeStruct((B, Lp), jnp.float32),
            grid_spec=pltpu.PrefetchScalarGridSpec(
                num_scalar_prefetch=0,
                grid=(n_tiles,),
                in_specs=[
                    # fused final-token gather: column block T-1 of (B, T*Dp)
                    pl.BlockSpec((TB, Dp), lambda i: (i, T - 1)),
                    # resident weight / bias: constant block -> single buffer
                    pl.BlockSpec((Dp, Lp), lambda i: (0, 0), **resident_kwargs),
                    pl.BlockSpec((1, Lp), lambda i: (0, 0), **resident_kwargs),
                ],
                out_specs=pl.BlockSpec((TB, Lp), lambda i: (i, 0)),
            ),
            compiler_params=pltpu.CompilerParams(
                dimension_semantics=("parallel",),
                vmem_limit_bytes=vmem_limit,
            ),
            cost_estimate=pl.CostEstimate(
                flops=2 * B * Dp * Lp,
                transcendentals=B * Lp,
                bytes_accessed=B * Dp * h_bytes + Dp * Lp * 2 + Lp * 4 + B * Lp * 4,
            ),
        )

    try:
        out_padded = _make_call(True)(h2, w_p, b_p)
    except Exception:
        # fallback if pipeline_mode=pl.Buffered(1) is unsupported on this JAX
        out_padded = _make_call(False)(h2, w_p, b_p)

    # strip label padding (batch axis is never padded)
    return out_padded[:, :L]


if __name__ == "__main__":
    # small synthetic config
    B, T, D = 2, 8, 32          # batch, seq, hidden dim (llama.config.dim)
    VOCAB, NUM_LABELS = 40, 5   # toy vocab, config.num_labels

    key = jax.random.PRNGKey(0)
    k_ids, k_emb, k_w, k_b = jax.random.split(key, 4)

    # deterministic "inputs" and parameters
    input_ids = jax.random.randint(k_ids, (B, T), 0, VOCAB)
    emb_table = jax.random.normal(k_emb, (VOCAB, D), dtype=jnp.float32) * 0.02
    w_head = jax.random.normal(k_w, (D, NUM_LABELS), dtype=jnp.float32) * 0.02
    b_head = jax.random.normal(k_b, (NUM_LABELS,), dtype=jnp.float32) * 0.02

    # backbone stand-in (glue, plain JAX): embedding lookup -> hidden states
    hidden_states = emb_table[input_ids]              # (B, T, D)

    log_probs = llama_embedding_classifier(hidden_states, w_head, b_head)
    jax.block_until_ready(log_probs)

    # sanity check vs. pure-JAX reference using the same bf16 MXU operands
    h_ref = hidden_states[:, -1, :]
    ref_logits = jnp.dot(h_ref.astype(jnp.bfloat16), w_head.astype(jnp.bfloat16),
                         preferred_element_type=jnp.float32) + b_head
    ref = jax.nn.log_softmax(ref_logits, axis=-1)
    assert log_probs.shape == (B, NUM_LABELS)
    assert jnp.allclose(log_probs, ref, atol=1e-4), "mismatch vs reference"

    print("KERNEL_OK")
</pallas_src>

<mosaic_0001>
module attributes {stable_mosaic.version = 11 : i64} {
  func.func @_classifier_kernel(%arg0: i32, %arg1: memref<2x128xf32, #tpu.memory_space<vmem>>, %arg2: memref<128x128xbf16, #tpu.memory_space<vmem>>, %arg3: memref<1x128xf32, #tpu.memory_space<vmem>>, %arg4: memref<2x128xf32, #tpu.memory_space<vmem>>) attributes {dimension_semantics = [#tpu.dimension_semantics<parallel>], iteration_bounds = array<i64: 1>, scalar_prefetch = 0 : i64, scratch_operands = 0 : i64, tpu.core_type = #tpu.core_type<tc>, window_params = [{transform_indices = @transform_0, window_bounds = array<i64: 2, 128>}, {pipeline_mode = #tpu.pipeline_mode<synchronous>, transform_indices = @transform_1, window_bounds = array<i64: 128, 128>}, {pipeline_mode = #tpu.pipeline_mode<synchronous>, transform_indices = @transform_2, window_bounds = array<i64: 1, 128>}, {transform_indices = @transform_3, window_bounds = array<i64: 2, 128>}]} {
    %c0 = arith.constant 0 : index
    %c0_0 = arith.constant 0 : index
    %0 = vector.load %arg1[%c0, %c0_0] : memref<2x128xf32, #tpu.memory_space<vmem>>, vector<2x128xf32>
    %1 = arith.truncf %0 : vector<2x128xf32> to vector<2x128xbf16>
    %c0_1 = arith.constant 0 : index
    %c0_2 = arith.constant 0 : index
    %2 = vector.load %arg2[%c0_1, %c0_2] : memref<128x128xbf16, #tpu.memory_space<vmem>>, vector<128x128xbf16>
    %cst = arith.constant dense<0.000000e+00> : vector<2x128xf32>
    %3 = tpu.matmul %1, %2, %cst {dimension_numbers = #tpu.dot_dimension_numbers<[1], [0], [0], [1], [0, 0, 1, 1], [], []>} : vector<2x128xbf16>, vector<128x128xbf16>, vector<2x128xf32> -> vector<2x128xf32>
    %c0_3 = arith.constant 0 : index
    %c0_4 = arith.constant 0 : index
    %4 = vector.load %arg3[%c0_3, %c0_4] : memref<1x128xf32, #tpu.memory_space<vmem>>, vector<1x128xf32>
    %5 = vector.broadcast %4 : vector<1x128xf32> to vector<2x128xf32>
    %6 = arith.addf %3, %5 : vector<2x128xf32>
    %cst_5 = arith.constant dense<0xFF800000> : vector<2xf32>
    %7 = vector.multi_reduction <maximumf>, %6, %cst_5 [1] : vector<2x128xf32> to vector<2xf32>
    %8 = vector.shape_cast %7 : vector<2xf32> to vector<2x1xf32>
    %9 = vector.broadcast %8 : vector<2x1xf32> to vector<2x128xf32>
    %10 = arith.subf %6, %9 : vector<2x128xf32>
    %11 = math.exp %10 : vector<2x128xf32>
    %cst_6 = arith.constant dense<0.000000e+00> : vector<2xf32>
    %12 = vector.multi_reduction <add>, %11, %cst_6 [1] : vector<2x128xf32> to vector<2xf32>
    %13 = vector.shape_cast %12 : vector<2xf32> to vector<2x1xf32>
    %14 = math.log %13 : vector<2x1xf32>
    %15 = vector.broadcast %14 : vector<2x1xf32> to vector<2x128xf32>
    %16 = arith.subf %10, %15 : vector<2x128xf32>
    %c0_7 = arith.constant 0 : index
    %c0_8 = arith.constant 0 : index
    %17 = vector.load %arg4[%c0_7, %c0_8] : memref<2x128xf32, #tpu.memory_space<vmem>>, vector<2x128xf32>
    tpu.vector_store %arg4[%c0_7, %c0_8], %16 {strides = array<i32>} : memref<2x128xf32, #tpu.memory_space<vmem>>, vector<2x128xf32>,
    return
  }
  func.func @transform_0(%arg0: i32) -> (i32, i32) {
    %c7_i32 = arith.constant 7 : i32
    %c0_i32 = arith.constant 0 : i32
    return %arg0, %c7_i32 : i32, i32
  }
  func.func @transform_1(%arg0: i32) -> (i32, i32) {
    %c0_i32 = arith.constant 0 : i32
    %c0_i32_0 = arith.constant 0 : i32
    %c0_i32_1 = arith.constant 0 : i32
    return %c0_i32, %c0_i32_0 : i32, i32
  }
  func.func @transform_2(%arg0: i32) -> (i32, i32) {
    %c0_i32 = arith.constant 0 : i32
    %c0_i32_0 = arith.constant 0 : i32
    %c0_i32_1 = arith.constant 0 : i32
    return %c0_i32, %c0_i32_0 : i32, i32
  }
  func.func @transform_3(%arg0: i32) -> (i32, i32) {
    %c0_i32 = arith.constant 0 : i32
    %c0_i32_0 = arith.constant 0 : i32
    return %arg0, %c0_i32 : i32, i32
  }
}

module attributes {stable_mosaic.version = 11 : i64} {
  func.func @_classifier_kernel(%arg0: i32, %arg1: memref<2x128xf32, #tpu.memory_space<vmem>>, %arg2: memref<128x128xbf16, #tpu.memory_space<vmem>>, %arg3: memref<1x128xf32, #tpu.memory_space<vmem>>, %arg4: memref<2x128xf32, #tpu.memory_space<vmem>>) attributes {dimension_semantics = [#tpu.dimension_semantics<parallel>], iteration_bounds = array<i64: 1>, scalar_prefetch = 0 : i64, scratch_operands = 0 : i64, tpu.core_type = #tpu.core_type<tc>, window_params = [{transform_indices = @transform_0, window_bounds = array<i64: 2, 128>}, {pipeline_mode = #tpu.pipeline_mode<synchronous>, transform_indices = @transform_1, window_bounds = array<i64: 128, 128>}, {pipeline_mode = #tpu.pipeline_mode<synchronous>, transform_indices = @transform_2, window_bounds = array<i64: 1, 128>}, {transform_indices = @transform_3, window_bounds = array<i64: 2, 128>}]} {
    %c0 = arith.constant 0 : index
    %c0_0 = arith.constant 0 : index
    %0 = vector.load %arg1[%c0, %c0_0] : memref<2x128xf32, #tpu.memory_space<vmem>>, vector<2x128xf32>
    %1 = arith.truncf %0 : vector<2x128xf32> to vector<2x128xbf16>
    %c0_1 = arith.constant 0 : index
    %c0_2 = arith.constant 0 : index
    %2 = vector.load %arg2[%c0_1, %c0_2] : memref<128x128xbf16, #tpu.memory_space<vmem>>, vector<128x128xbf16>
    %cst = arith.constant dense<0.000000e+00> : vector<2x128xf32>
    %3 = tpu.matmul %1, %2, %cst {dimension_numbers = #tpu.dot_dimension_numbers<[1], [0], [0], [1], [0, 0, 1, 1], [], []>} : vector<2x128xbf16>, vector<128x128xbf16>, vector<2x128xf32> -> vector<2x128xf32>
    %c0_3 = arith.constant 0 : index
    %c0_4 = arith.constant 0 : index
    %4 = vector.load %arg3[%c0_3, %c0_4] : memref<1x128xf32, #tpu.memory_space<vmem>>, vector<1x128xf32>
    %5 = vector.broadcast %4 : vector<1x128xf32> to vector<2x128xf32>
    %6 = arith.addf %3, %5 : vector<2x128xf32>
    %cst_5 = arith.constant dense<0xFF800000> : vector<2xf32>
    %7 = vector.multi_reduction <maximumf>, %6, %cst_5 [1] : vector<2x128xf32> to vector<2xf32>
    %8 = vector.shape_cast %7 : vector<2xf32> to vector<2x1xf32>
    %9 = vector.broadcast %8 : vector<2x1xf32> to vector<2x128xf32>
    %10 = arith.subf %6, %9 : vector<2x128xf32>
    %11 = math.exp %10 : vector<2x128xf32>
    %cst_6 = arith.constant dense<0.000000e+00> : vector<2xf32>
    %12 = vector.multi_reduction <add>, %11, %cst_6 [1] : vector<2x128xf32> to vector<2xf32>
    %13 = vector.shape_cast %12 : vector<2xf32> to vector<2x1xf32>
    %14 = math.log %13 : vector<2x1xf32>
    %15 = vector.broadcast %14 : vector<2x1xf32> to vector<2x128xf32>
    %16 = arith.subf %10, %15 : vector<2x128xf32>
    %c0_7 = arith.constant 0 : index
    %c0_8 = arith.constant 0 : index
    %17 = vector.load %arg4[%c0_7, %c0_8] : memref<2x128xf32, #tpu.memory_space<vmem>>, vector<2x128xf32>
    tpu.vector_store %arg4[%c0_7, %c0_8], %16 {strides = array<i32>} : memref<2x128xf32, #tpu.memory_space<vmem>>, vector<2x128xf32>,
    return
  }
  func.func @transform_0(%arg0: i32) -> (i32, i32) {
    %c7_i32 = arith.constant 7 : i32
    %c0_i32 = arith.constant 0 : i32
    return %arg0, %c7_i32 : i32, i32
  }
  func.func @transform_1(%arg0: i32) -> (i32, i32) {
    %c0_i32 = arith.constant 0 : i32
    %c0_i32_0 = arith.constant 0 : i32
    %c0_i32_1 = arith.constant 0 : i32
    return %c0_i32, %c0_i32_0 : i32, i32
  }
  func.func @transform_2(%arg0: i32) -> (i32, i32) {
    %c0_i32 = arith.constant 0 : i32
    %c0_i32_0 = arith.constant 0 : i32
    %c0_i32_1 = arith.constant 0 : i32
    return %c0_i32, %c0_i32_0 : i32, i32
  }
  func.func @transform_3(%arg0: i32) -> (i32, i32) {
    %c0_i32 = arith.constant 0 : i32
    %c0_i32_0 = arith.constant 0 : i32
    return %arg0, %c0_i32 : i32, i32
  }
}

</mosaic_0001>

<llo_original>
// kernel: tpu_custom_call.1
$region0: #{tpu_custom_call.1}
  #allocation0 [shape = 'u32[]', space=smem, size = 0x4, offset = 0x4, fixed_abs, tag = 'smem constant byte address 0x4 - core index']
  #allocation1 [shape = 'u32[144,128]{1,0:T(1,128)}', space=vmem, size = 0x12000, scoped, tag = 'internal scratch']
  %s0 = inlined_call_operand.hbm [shape: f32[2,1024], index: 0, kind: input, shape index: {}]
  %s1 = inlined_call_operand.hbm [shape: bf16[128,128], index: 1, kind: input, shape index: {}]
  %s2 = inlined_call_operand.hbm [shape: f32[1,128], index: 2, kind: input, shape index: {}]
  %s3 = inlined_call_operand.hbm [shape: f32[2,128], index: 3, kind: output, shape index: {}]
  %s4 = sld [smem:[#allocation0]]
  $region34: #{tpu_custom_call.1} parent=0
    _
  %s6 = ssub.s32 1, %s4
  %s7 = scalar_select 0, %s6, %s4
  $region1: #{tpu_custom_call.1} parent=0
    #allocation2 [shape = 'u8[1024]{0}', space=vmem, size = 0x400, scoped, tag = 'input window, operand 0, single buffered']
    #allocation3 [shape = 's32[1]{0}', space=sflag, size = 0x4, scoped, tag = 'scoped memory for tpu_custom_call.1']
    #allocation4 [shape = 's32[1]{0}', space=sflag, size = 0x4, scoped, tag = 'scoped memory for tpu_custom_call.1']
    #allocation5 [shape = 'u8[32768]{0}', space=vmem, size = 0x8000, scoped, tag = 'input window, operand 1, single buffered']
    #allocation6 [shape = 's32[1]{0}', space=sflag, size = 0x4, scoped, tag = 'scoped memory for tpu_custom_call.1']
    #allocation7 [shape = 'u8[512]{0}', space=vmem, size = 0x400, scoped, tag = 'input window, operand 2, single buffered']
    #allocation8 [shape = 'u8[1024]{0}', space=vmem, size = 0x400, scoped, tag = 'output window, operand 0, single buffered']
    %8 = vsyncpa [#allocation3], 0
    %9 = vsyncpa [#allocation6], 0
    %10 = vsyncpa [#allocation4], 0
    // Predicated region
    $region2: #{tpu_custom_call.1} parent=1 // pred_check
      _
    $region3: #{tpu_custom_call.1} parent=1 // pred_check_branch
      %12 = sbr.rel (0) target = $region5
    $region4: #{tpu_custom_call.1} parent=1 // pred_region
      %s14 = ssub.s32 32, 32
      %15 = vsyncadd [#allocation3], %s14
      %s16 = scalar_lea.hbm %s0, 224
      %s18 = sshll.u32 [#allocation2], 4
      %s19 = int_to_ptr.vmem [resolvable:$true] %s18
      %21 = dma.hbm_to_vmem [thread:$0]  %s16, 32, %s19, [#allocation3]
    $region5: #{tpu_custom_call.1} parent=1 // pred_fallthru
      _
    // Predicated region
    $region6: #{tpu_custom_call.1} parent=1 // pred_check
      _
    $region7: #{tpu_custom_call.1} parent=1 // pred_check_branch
      %23 = sbr.rel (0) target = $region9
    $region8: #{tpu_custom_call.1} parent=1 // pred_region
      %s25 = ssub.s32 1024, 1024
      %26 = vsyncadd [#allocation6], %s25
      %s27 = sshll.u32 [#allocation5], 4
      %s28 = int_to_ptr.vmem [resolvable:$true] %s27
      %33 = dma.hbm_to_vmem [thread:$0]  %s1, 1024, %s28, [#allocation6], 64, 64, 4
    $region9: #{tpu_custom_call.1} parent=1 // pred_fallthru
      _
    // Predicated region
    $region10: #{tpu_custom_call.1} parent=1 // pred_check
      _
    $region11: #{tpu_custom_call.1} parent=1 // pred_check_branch
      %35 = sbr.rel (0) target = $region13
    $region12: #{tpu_custom_call.1} parent=1 // pred_region
      %s37 = ssub.s32 16, 16
      %38 = vsyncadd [#allocation6], %s37
      %s40 = sshll.u32 [#allocation7], 4
      %s41 = int_to_ptr.vmem [resolvable:$true] %s40
      %43 = dma.hbm_to_vmem [thread:$0]  %s2, 16, %s41, [#allocation6]
    $region13: #{tpu_custom_call.1} parent=1 // pred_fallthru
      _
    // Predicated region
    $region14: #{tpu_custom_call.1} parent=1 // pred_check
      _
    $region15: #{tpu_custom_call.1} parent=1 // pred_check_branch
      %45 = sbr.rel (0) target = $region17
    $region16: #{tpu_custom_call.1} parent=1 // pred_region
      %46 = dma.done [#allocation3], 32
    $region17: #{tpu_custom_call.1} parent=1 // pred_fallthru
      _
    // Predicated region
    $region18: #{tpu_custom_call.1} parent=1 // pred_check
      _
    $region19: #{tpu_custom_call.1} parent=1 // pred_check_branch
      %48 = sbr.rel (0) target = $region21
    $region20: #{tpu_custom_call.1} parent=1 // pred_region
      %49 = dma.done [#allocation6], 1024
    $region21: #{tpu_custom_call.1} parent=1 // pred_fallthru
      _
    // Predicated region
    $region22: #{tpu_custom_call.1} parent=1 // pred_check
      _
    $region23: #{tpu_custom_call.1} parent=1 // pred_check_branch
      %51 = sbr.rel (0) target = $region25
    $region24: #{tpu_custom_call.1} parent=1 // pred_region
      %52 = dma.done [#allocation6], 16
    $region25: #{tpu_custom_call.1} parent=1 // pred_fallthru
      _
    %v54 = vld [vmem:[#allocation2] sm:$0x3]
    %v55 = vpack.c.bf16 %v54, %v54
    %v56 = vld [vmem:[#allocation5] sm:$0xf]
    %v57 = vld [vmem:[#allocation5 + $0x4] sm:$0xf]
    %v58 = vld [vmem:[#allocation5 + $0x8] sm:$0xf]
    %v59 = vld [vmem:[#allocation5 + $0xc] sm:$0xf]
    %v60 = vld [vmem:[#allocation5 + $0x10] sm:$0xf]
    %v61 = vld [vmem:[#allocation5 + $0x14] sm:$0xf]
    %v62 = vld [vmem:[#allocation5 + $0x18] sm:$0xf]
    %v63 = vld [vmem:[#allocation5 + $0x1c] sm:$0xf]
    %v64 = vld [vmem:[#allocation5 + $0x20] sm:$0xf]
    %v65 = vld [vmem:[#allocation5 + $0x24] sm:$0xf]
    %v66 = vld [vmem:[#allocation5 + $0x28] sm:$0xf]
    %v67 = vld [vmem:[#allocation5 + $0x2c] sm:$0xf]
    %v68 = vld [vmem:[#allocation5 + $0x30] sm:$0xf]
    %v69 = vld [vmem:[#allocation5 + $0x34] sm:$0xf]
    %v70 = vld [vmem:[#allocation5 + $0x38] sm:$0xf]
    %v71 = vld [vmem:[#allocation5 + $0x3c] sm:$0xf]
    %v72 = vld [vmem:[#allocation7] sm:$0x1]
    %v74 = vlaneseq
    %v75 = vshrl.u32 %v74, 7
    %v76 = vsub.s32 0, %v75
    %v77 = vrot.slane %v72, %v76
    %v95 = vunpack.c.l.b16 %v56
    %v96 = vunpack.c.l.b16 %v57
    %v97 = vunpack.c.l.b16 %v58
    %v98 = vunpack.c.l.b16 %v59
    %v99 = vunpack.c.l.b16 %v60
    %v100 = vunpack.c.l.b16 %v61
    %v101 = vunpack.c.l.b16 %v62
    %v102 = vunpack.c.l.b16 %v63
    %v103 = vunpack.c.l.b16 %v64
    %v104 = vunpack.c.l.b16 %v65
    %v105 = vunpack.c.l.b16 %v66
    %v106 = vunpack.c.l.b16 %v67
    %v107 = vunpack.c.l.b16 %v68
    %v108 = vunpack.c.l.b16 %v69
    %v109 = vunpack.c.l.b16 %v70
    %v110 = vunpack.c.l.b16 %v71
    %v111 = vpack.c.b16 %v96, %v95
    %v112 = vpack.c.b16 %v98, %v97
    %v113 = vpack.c.b16 %v100, %v99
    %v114 = vpack.c.b16 %v102, %v101
    %v115 = vpack.c.b16 %v104, %v103
    %v116 = vpack.c.b16 %v106, %v105
    %v117 = vpack.c.b16 %v108, %v107
    %v118 = vpack.c.b16 %v110, %v109
    %127 = vmatprep.subr.bf16.mxu0 0
    %128 = vmatpush1.bf16.msra.mxu0 %v111
    %129 = vmatprep.subr.bf16.mxu0 0
    %130 = vmatpush1.bf16.msra.mxu0 %v112
    %131 = vmatprep.subr.bf16.mxu0 0
    %132 = vmatpush1.bf16.msra.mxu0 %v113
    %133 = vmatprep.subr.bf16.mxu0 0
    %134 = vmatpush1.bf16.msra.mxu0 %v114
    %135 = vmatprep.subr.bf16.mxu0 0
    %136 = vmatpush1.bf16.msra.mxu0 %v115
    %137 = vmatprep.subr.bf16.mxu0 0
    %138 = vmatpush1.bf16.msra.mxu0 %v116
    %139 = vmatprep.subr.bf16.mxu0 0
    %140 = vmatpush1.bf16.msra.mxu0 %v117
    %141 = vmatprep.subr.bf16.mxu0 0
    %142 = vmatpush1.bf16.msra.mxu0 %v118
    %143 = vmatprep.subr.bf16.mxu0 0
    %144 = vmatpush1.bf16.msra.mxu0 0
    %145 = vmatprep.subr.bf16.mxu0 0
    %146 = vmatpush1.bf16.msra.mxu0 0
    %147 = vmatprep.subr.bf16.mxu0 0
    %148 = vmatpush1.bf16.msra.mxu0 0
    %149 = vmatprep.subr.bf16.mxu0 0
    %150 = vmatpush1.bf16.msra.mxu0 0
    %151 = vmatprep.subr.bf16.mxu0 0
    %152 = vmatpush1.bf16.msra.mxu0 0
    %153 = vmatprep.subr.bf16.mxu0 0
    %154 = vmatpush1.bf16.msra.mxu0 0
    %155 = vmatprep.subr.bf16.mxu0 0
    %156 = vmatpush1.bf16.msra.mxu0 0
    %157 = vmatprep.subr.bf16.mxu0 0
    %158 = vmatpush1.bf16.msra.mxu0 0
    %159 = vmatprep.mubr.bf16.mxu0 0
    %160 = vmatmul.mubr.bf16.gmra.mrb[0].mxu0 %v55
    %v161 = vpop.f32.mrb[0].mxu0
    %v162 = vadd.f32 %v77, %v161
    %v163 = vpop.f32.mrb[0].mxu0
    %v164 = vpop.f32.mrb[0].mxu0
    %v165 = vpop.f32.mrb[0].mxu0
    %166 = vdwg.mxu0
    %vm167 = vcmask 1041408
    %v168 = vsel %vm167, %v162, -inf
    %169 = vmax.xlane.f32.xlu0 %v168
    %v170 = vpop.xlane.xlu0 %169
    %v171 = vsub.f32 %v162, %v170
    %v172 = vmul.f32 %v171, 1.442695
    %v173 = vpow.pop %v172
    %v174 = vsel %vm167, %v173, 0.0
    %175 = vadd.xlane.f32.xlu0 %v174
    %v176 = vpop.xlane.xlu0 %175
    %v177 = vlog2.pop %v176
    %v178 = vmul.f32 %v177, 0.6931472
    %v179 = vsub.f32 %v171, %v178
    %180 = vst [vmem:[#allocation8] sm:$0x3] %v179
    // Predicated region
    $region26: #{tpu_custom_call.1} parent=1 // pred_check
      _
    $region27: #{tpu_custom_call.1} parent=1 // pred_check_branch
      %182 = sbr.rel (0) target = $region29
    $region28: #{tpu_custom_call.1} parent=1 // pred_region
      %s184 = ssub.s32 32, 32
      %185 = vsyncadd [#allocation4], %s184
      %s187 = sshll.u32 [#allocation8], 4
      %s188 = int_to_ptr.vmem [resolvable:$true] %s187
      %190 = dma.vmem_to_hbm [thread:$0]  %s188, 32, %s3, [#allocation4]
    $region29: #{tpu_custom_call.1} parent=1 // pred_fallthru
      _
    // Predicated region
    $region30: #{tpu_custom_call.1} parent=1 // pred_check
      _
    $region31: #{tpu_custom_call.1} parent=1 // pred_check_branch
      %192 = sbr.rel (0) target = $region33
    $region32: #{tpu_custom_call.1} parent=1 // pred_region
      %193 = dma.done [#allocation4], 32
    $region33: #{tpu_custom_call.1} parent=1 // pred_fallthru
      _
    %194 = vsyncpa [#allocation3], 1
    %195 = vsyncpa [#allocation6], 1
    %196 = vsyncpa [#allocation4], 1

// kernel: tpu_custom_call.1
$region0: #{tpu_custom_call.1}
  #allocation0 [shape = 'u32[]', space=smem, size = 0x4, offset = 0x4, fixed_abs, tag = 'smem constant byte address 0x4 - core index']
  #allocation1 [shape = 'u32[144,128]{1,0:T(1,128)}', space=vmem, size = 0x12000, scoped, tag = 'internal scratch']
  %s0 = inlined_call_operand.hbm [shape: f32[2,1024], index: 0, kind: input, shape index: {}]
  %s1 = inlined_call_operand.hbm [shape: bf16[128,128], index: 1, kind: input, shape index: {}]
  %s2 = inlined_call_operand.hbm [shape: f32[1,128], index: 2, kind: input, shape index: {}]
  %s3 = inlined_call_operand.hbm [shape: f32[2,128], index: 3, kind: output, shape index: {}]
  %s4 = sld [smem:[#allocation0]]
  $region34: #{tpu_custom_call.1} parent=0
    _
  %s6 = ssub.s32 1, %s4
  %s7 = scalar_select 0, %s6, %s4
  $region1: #{tpu_custom_call.1} parent=0
    #allocation2 [shape = 'u8[1024]{0}', space=vmem, size = 0x400, scoped, tag = 'input window, operand 0, single buffered']
    #allocation3 [shape = 's32[1]{0}', space=sflag, size = 0x4, scoped, tag = 'scoped memory for tpu_custom_call.1']
    #allocation4 [shape = 's32[1]{0}', space=sflag, size = 0x4, scoped, tag = 'scoped memory for tpu_custom_call.1']
    #allocation5 [shape = 'u8[32768]{0}', space=vmem, size = 0x8000, scoped, tag = 'input window, operand 1, single buffered']
    #allocation6 [shape = 's32[1]{0}', space=sflag, size = 0x4, scoped, tag = 'scoped memory for tpu_custom_call.1']
    #allocation7 [shape = 'u8[512]{0}', space=vmem, size = 0x400, scoped, tag = 'input window, operand 2, single buffered']
    #allocation8 [shape = 'u8[1024]{0}', space=vmem, size = 0x400, scoped, tag = 'output window, operand 0, single buffered']
    %8 = vsyncpa [#allocation3], 0
    %9 = vsyncpa [#allocation6], 0
    %10 = vsyncpa [#allocation4], 0
    // Predicated region
    $region2: #{tpu_custom_call.1} parent=1 // pred_check
      _
    $region3: #{tpu_custom_call.1} parent=1 // pred_check_branch
      %12 = sbr.rel (0) target = $region5
    $region4: #{tpu_custom_call.1} parent=1 // pred_region
      %s14 = ssub.s32 32, 32
      %15 = vsyncadd [#allocation3], %s14
      %s16 = scalar_lea.hbm %s0, 224
      %s18 = sshll.u32 [#allocation2], 4
      %s19 = int_to_ptr.vmem [resolvable:$true] %s18
      %21 = dma.hbm_to_vmem [thread:$0]  %s16, 32, %s19, [#allocation3]
    $region5: #{tpu_custom_call.1} parent=1 // pred_fallthru
      _
    // Predicated region
    $region6: #{tpu_custom_call.1} parent=1 // pred_check
      _
    $region7: #{tpu_custom_call.1} parent=1 // pred_check_branch
      %23 = sbr.rel (0) target = $region9
    $region8: #{tpu_custom_call.1} parent=1 // pred_region
      %s25 = ssub.s32 1024, 1024
      %26 = vsyncadd [#allocation6], %s25
      %s27 = sshll.u32 [#allocation5], 4
      %s28 = int_to_ptr.vmem [resolvable:$true] %s27
      %33 = dma.hbm_to_vmem [thread:$0]  %s1, 1024, %s28, [#allocation6], 64, 64, 4
    $region9: #{tpu_custom_call.1} parent=1 // pred_fallthru
      _
    // Predicated region
    $region10: #{tpu_custom_call.1} parent=1 // pred_check
      _
    $region11: #{tpu_custom_call.1} parent=1 // pred_check_branch
      %35 = sbr.rel (0) target = $region13
    $region12: #{tpu_custom_call.1} parent=1 // pred_region
      %s37 = ssub.s32 16, 16
      %38 = vsyncadd [#allocation6], %s37
      %s40 = sshll.u32 [#allocation7], 4
      %s41 = int_to_ptr.vmem [resolvable:$true] %s40
      %43 = dma.hbm_to_vmem [thread:$0]  %s2, 16, %s41, [#allocation6]
    $region13: #{tpu_custom_call.1} parent=1 // pred_fallthru
      _
    // Predicated region
    $region14: #{tpu_custom_call.1} parent=1 // pred_check
      _
    $region15: #{tpu_custom_call.1} parent=1 // pred_check_branch
      %45 = sbr.rel (0) target = $region17
    $region16: #{tpu_custom_call.1} parent=1 // pred_region
      %46 = dma.done [#allocation3], 32
    $region17: #{tpu_custom_call.1} parent=1 // pred_fallthru
      _
    // Predicated region
    $region18: #{tpu_custom_call.1} parent=1 // pred_check
      _
    $region19: #{tpu_custom_call.1} parent=1 // pred_check_branch
      %48 = sbr.rel (0) target = $region21
    $region20: #{tpu_custom_call.1} parent=1 // pred_region
      %49 = dma.done [#allocation6], 1024
    $region21: #{tpu_custom_call.1} parent=1 // pred_fallthru
      _
    // Predicated region
    $region22: #{tpu_custom_call.1} parent=1 // pred_check
      _
    $region23: #{tpu_custom_call.1} parent=1 // pred_check_branch
      %51 = sbr.rel (0) target = $region25
    $region24: #{tpu_custom_call.1} parent=1 // pred_region
      %52 = dma.done [#allocation6], 16
    $region25: #{tpu_custom_call.1} parent=1 // pred_fallthru
      _
    %v54 = vld [vmem:[#allocation2] sm:$0x3]
    %v55 = vpack.c.bf16 %v54, %v54
    %v56 = vld [vmem:[#allocation5] sm:$0xf]
    %v57 = vld [vmem:[#allocation5 + $0x4] sm:$0xf]
    %v58 = vld [vmem:[#allocation5 + $0x8] sm:$0xf]
    %v59 = vld [vmem:[#allocation5 + $0xc] sm:$0xf]
    %v60 = vld [vmem:[#allocation5 + $0x10] sm:$0xf]
    %v61 = vld [vmem:[#allocation5 + $0x14] sm:$0xf]
    %v62 = vld [vmem:[#allocation5 + $0x18] sm:$0xf]
    %v63 = vld [vmem:[#allocation5 + $0x1c] sm:$0xf]
    %v64 = vld [vmem:[#allocation5 + $0x20] sm:$0xf]
    %v65 = vld [vmem:[#allocation5 + $0x24] sm:$0xf]
    %v66 = vld [vmem:[#allocation5 + $0x28] sm:$0xf]
    %v67 = vld [vmem:[#allocation5 + $0x2c] sm:$0xf]
    %v68 = vld [vmem:[#allocation5 + $0x30] sm:$0xf]
    %v69 = vld [vmem:[#allocation5 + $0x34] sm:$0xf]
    %v70 = vld [vmem:[#allocation5 + $0x38] sm:$0xf]
    %v71 = vld [vmem:[#allocation5 + $0x3c] sm:$0xf]
    %v72 = vld [vmem:[#allocation7] sm:$0x1]
    %v74 = vlaneseq
    %v75 = vshrl.u32 %v74, 7
    %v76 = vsub.s32 0, %v75
    %v77 = vrot.slane %v72, %v76
    %v95 = vunpack.c.l.b16 %v56
    %v96 = vunpack.c.l.b16 %v57
    %v97 = vunpack.c.l.b16 %v58
    %v98 = vunpack.c.l.b16 %v59
    %v99 = vunpack.c.l.b16 %v60
    %v100 = vunpack.c.l.b16 %v61
    %v101 = vunpack.c.l.b16 %v62
    %v102 = vunpack.c.l.b16 %v63
    %v103 = vunpack.c.l.b16 %v64
    %v104 = vunpack.c.l.b16 %v65
    %v105 = vunpack.c.l.b16 %v66
    %v106 = vunpack.c.l.b16 %v67
    %v107 = vunpack.c.l.b16 %v68
    %v108 = vunpack.c.l.b16 %v69
    %v109 = vunpack.c.l.b16 %v70
    %v110 = vunpack.c.l.b16 %v71
    %v111 = vpack.c.b16 %v96, %v95
    %v112 = vpack.c.b16 %v98, %v97
    %v113 = vpack.c.b16 %v100, %v99
    %v114 = vpack.c.b16 %v102, %v101
    %v115 = vpack.c.b16 %v104, %v103
    %v116 = vpack.c.b16 %v106, %v105
    %v117 = vpack.c.b16 %v108, %v107
    %v118 = vpack.c.b16 %v110, %v109
    %127 = vmatprep.subr.bf16.mxu0 0
    %128 = vmatpush1.bf16.msra.mxu0 %v111
    %129 = vmatprep.subr.bf16.mxu0 0
    %130 = vmatpush1.bf16.msra.mxu0 %v112
    %131 = vmatprep.subr.bf16.mxu0 0
    %132 = vmatpush1.bf16.msra.mxu0 %v113
    %133 = vmatprep.subr.bf16.mxu0 0
    %134 = vmatpush1.bf16.msra.mxu0 %v114
    %135 = vmatprep.subr.bf16.mxu0 0
    %136 = vmatpush1.bf16.msra.mxu0 %v115
    %137 = vmatprep.subr.bf16.mxu0 0
    %138 = vmatpush1.bf16.msra.mxu0 %v116
    %139 = vmatprep.subr.bf16.mxu0 0
    %140 = vmatpush1.bf16.msra.mxu0 %v117
    %141 = vmatprep.subr.bf16.mxu0 0
    %142 = vmatpush1.bf16.msra.mxu0 %v118
    %143 = vmatprep.subr.bf16.mxu0 0
    %144 = vmatpush1.bf16.msra.mxu0 0
    %145 = vmatprep.subr.bf16.mxu0 0
    %146 = vmatpush1.bf16.msra.mxu0 0
    %147 = vmatprep.subr.bf16.mxu0 0
    %148 = vmatpush1.bf16.msra.mxu0 0
    %149 = vmatprep.subr.bf16.mxu0 0
    %150 = vmatpush1.bf16.msra.mxu0 0
    %151 = vmatprep.subr.bf16.mxu0 0
    %152 = vmatpush1.bf16.msra.mxu0 0
    %153 = vmatprep.subr.bf16.mxu0 0
    %154 = vmatpush1.bf16.msra.mxu0 0
    %155 = vmatprep.subr.bf16.mxu0 0
    %156 = vmatpush1.bf16.msra.mxu0 0
    %157 = vmatprep.subr.bf16.mxu0 0
    %158 = vmatpush1.bf16.msra.mxu0 0
    %159 = vmatprep.mubr.bf16.mxu0 0
    %160 = vmatmul.mubr.bf16.gmra.mrb[0].mxu0 %v55
    %v161 = vpop.f32.mrb[0].mxu0
    %v162 = vadd.f32 %v77, %v161
    %v163 = vpop.f32.mrb[0].mxu0
    %v164 = vpop.f32.mrb[0].mxu0
    %v165 = vpop.f32.mrb[0].mxu0
    %166 = vdwg.mxu0
    %vm167 = vcmask 1041408
    %v168 = vsel %vm167, %v162, -inf
    %169 = vmax.xlane.f32.xlu0 %v168
    %v170 = vpop.xlane.xlu0 %169
    %v171 = vsub.f32 %v162, %v170
    %v172 = vmul.f32 %v171, 1.442695
    %v173 = vpow.pop %v172
    %v174 = vsel %vm167, %v173, 0.0
    %175 = vadd.xlane.f32.xlu0 %v174
    %v176 = vpop.xlane.xlu0 %175
    %v177 = vlog2.pop %v176
    %v178 = vmul.f32 %v177, 0.6931472
    %v179 = vsub.f32 %v171, %v178
    %180 = vst [vmem:[#allocation8] sm:$0x3] %v179
    // Predicated region
    $region26: #{tpu_custom_call.1} parent=1 // pred_check
      _
    $region27: #{tpu_custom_call.1} parent=1 // pred_check_branch
      %182 = sbr.rel (0) target = $region29
    $region28: #{tpu_custom_call.1} parent=1 // pred_region
      %s184 = ssub.s32 32, 32
      %185 = vsyncadd [#allocation4], %s184
      %s187 = sshll.u32 [#allocation8], 4
      %s188 = int_to_ptr.vmem [resolvable:$true] %s187
      %190 = dma.vmem_to_hbm [thread:$0]  %s188, 32, %s3, [#allocation4]
    $region29: #{tpu_custom_call.1} parent=1 // pred_fallthru
      _
    // Predicated region
    $region30: #{tpu_custom_call.1} parent=1 // pred_check
      _
    $region31: #{tpu_custom_call.1} parent=1 // pred_check_branch
      %192 = sbr.rel (0) target = $region33
    $region32: #{tpu_custom_call.1} parent=1 // pred_region
      %193 = dma.done [#allocation4], 32
    $region33: #{tpu_custom_call.1} parent=1 // pred_fallthru
      _
    %194 = vsyncpa [#allocation3], 1
    %195 = vsyncpa [#allocation6], 1
    %196 = vsyncpa [#allocation4], 1

</llo_original>
